<compile_context>
chip_gen: v5e
topology: v5e:2x2
jax: 0.10.0
libtpu: 0.0.40
codegen_flags: <defaults>
</compile_context>

<pallas_src>
import jax
import jax.numpy as jnp
from jax.experimental import pallas as pl
from jax.experimental.pallas import tpu as pltpu


# ----------------------------------------------------------------------------- kernel

def _rga_kernel(src_ref, attn_ref, w1_ref, sh1_ref, w2_ref, sh2_ref, out_ref):
    Bt, D, L = src_ref.shape
    K = w1_ref.shape[1] // D
    P = K // 2
    NL = Bt * L

    # ---- bmm per batch element (each batch has its own attn), lane-concat results.
    ys = [jnp.dot(src_ref[b], attn_ref[b], preferred_element_type=jnp.float32)
          for b in range(Bt)]
    y = ys[0] if Bt == 1 else jnp.concatenate(ys, axis=1)            # (D, Bt*L) f32

    # Within-batch lane position: zeroes lanes whose rolled value wrapped across a
    # batch (or tile) boundary -> exact 'same' zero padding for the conv.
    lane = jax.lax.broadcasted_iota(jnp.int32, (D, NL), 1) % L

    def conv_bn_relu(inp, w_ref, sh_ref):
        taps = []
        for k in range(K):                       # static unroll, K is small (3)
            s = P - k                            # tap k reads x[l + k - P]
            if s == 0:
                taps.append(inp)
            else:
                shifted = pltpu.roll(inp, shift=s % NL, axis=1)      # XLU rotate
                valid = (lane >= s) & (lane < L + s)
                taps.append(jnp.where(valid, shifted, 0.0))
        stacked = jnp.concatenate(taps, axis=0)                      # (K*D, Bt*L)
        # Single MXU push per conv; weights already carry the folded BN scale.
        acc = jnp.dot(w_ref[...], stacked.astype(w_ref.dtype),
                      preferred_element_type=jnp.float32)            # (D, Bt*L)
        return jnp.maximum(acc + sh_ref[...], 0.0)                   # shift + ReLU

    h = conv_bn_relu(y, w1_ref, sh1_ref)
    h = conv_bn_relu(h, w2_ref, sh2_ref)

    # Residual + ReLU, written back per batch element (lane-aligned static slices).
    for b in range(Bt):
        res = src_ref[b].astype(jnp.float32) + h[:, b * L:(b + 1) * L]
        out_ref[b] = jnp.maximum(res, 0.0).astype(out_ref.dtype)


# ----------------------------------------------------------------------------- wrapper

def _fold_conv_bn(params, eps=1e-5):
    """(w[D,D,K], bias, gamma, beta, mean, var) -> (BN-scaled tap-stacked (D, K*D) weight,
    (D, 1) shift)."""
    w, b, gamma, beta, mean, var = params
    D_out, D_in, K = w.shape
    scale = gamma / jnp.sqrt(var + eps)                              # (D,)
    shift = (b - mean) * scale + beta                                # (D,)
    w_scaled = w * scale[:, None, None]                              # fold BN scale into weights
    # (D_out, D_in, K) -> (D_out, K, D_in) -> (D_out, K*D_in): column block k == w[:, :, k]
    w_stacked = jnp.transpose(w_scaled, (0, 2, 1)).reshape(D_out, K * D_in)
    return w_stacked, shift.reshape(D_out, 1)


def _pick_block_b(B, D, L, itemsize, budget_bytes=16 << 20):
    """Largest batch block whose double-buffered per-step tiles fit the budget,
    preferring >= 2 grid steps so both v7x TensorCores get work."""
    per_batch = (2 * D * L + L * L) * itemsize                       # src + out + attn
    fitting = [d for d in range(1, min(B, 8) + 1)
               if B % d == 0 and 2 * d * per_batch <= budget_bytes]
    if not fitting:
        return 1
    multi = [d for d in fitting if B // d >= 2]
    return max(multi) if multi else max(fitting)


def residual_graph_attention(src, attn, conv1_params, conv2_params, *,
                             compute_dtype=jnp.float32, block_b=None, eps=1e-5):
    B, D, L = src.shape
    K = conv1_params[0].shape[-1]
    assert K % 2 == 1, "'same' padding path assumes an odd kernel size"

    w1, sh1 = _fold_conv_bn(conv1_params, eps)
    w2, sh2 = _fold_conv_bn(conv2_params, eps)

    itemsize = jnp.dtype(compute_dtype).itemsize
    if block_b is None:
        block_b = _pick_block_b(B, D, L, itemsize)
    if B % block_b != 0:
        raise ValueError(f"block_b={block_b} must divide batch size {B}")

    src_c = src.astype(compute_dtype)
    attn_c = attn.astype(compute_dtype)
    w1_c = w1.astype(compute_dtype)
    w2_c = w2.astype(compute_dtype)

    grid_spec = pltpu.PrefetchScalarGridSpec(
        num_scalar_prefetch=0,
        grid=(B // block_b,),
        in_specs=[
            pl.BlockSpec((block_b, D, L), lambda b: (b, 0, 0)),      # src
            pl.BlockSpec((block_b, L, L), lambda b: (b, 0, 0)),      # attn
            # Constant-index blocks: pipeline keeps them resident (no re-DMA when
            # the block index is unchanged between consecutive grid steps).
            pl.BlockSpec((D, K * D), lambda b: (0, 0)),              # w1 (scaled, tap-stacked)
            pl.BlockSpec((D, 1), lambda b: (0, 0)),                  # shift1
            pl.BlockSpec((D, K * D), lambda b: (0, 0)),              # w2
            pl.BlockSpec((D, 1), lambda b: (0, 0)),                  # shift2
        ],
        out_specs=pl.BlockSpec((block_b, D, L), lambda b: (b, 0, 0)),
    )

    # Explicit VMEM limit: double-buffered per-step blocks + weights + slack for
    # in-kernel intermediates; capped well below v7x's 64 MiB physical VMEM.
    blk_bytes = block_b * (2 * D * L + L * L) * itemsize
    w_bytes = 2 * (K * D * D * itemsize + 4 * D)
    interm_bytes = (2 * K + 6) * D * block_b * L * 4
    vmem_limit = int(min(48 << 20,
                         max(16 << 20, 2 * (blk_bytes + w_bytes) + interm_bytes + (4 << 20))))

    return pl.pallas_call(
        _rga_kernel,
        out_shape=jax.ShapeDtypeStruct((B, D, L), jnp.float32),
        grid_spec=grid_spec,
        compiler_params=pltpu.CompilerParams(
            dimension_semantics=("parallel",),
            vmem_limit_bytes=vmem_limit),
    )(src_c, attn_c, w1_c, sh1, w2_c, sh2)


# ----------------------------------------------------------------------------- test setup

def _make_conv_bn_params(key, D, K):
    """Deterministic init mimicking nn.Conv1d + nn.BatchNorm1d (eval mode)."""
    k_w, k_b, k_g, k_be, k_m, k_v = jax.random.split(key, 6)
    bound = 1.0 / jnp.sqrt(jnp.asarray(D * K, jnp.float32))
    w = jax.random.uniform(k_w, (D, D, K), jnp.float32, -bound, bound)
    bias = jax.random.uniform(k_b, (D,), jnp.float32, -bound, bound)
    gamma = 1.0 + 0.1 * jax.random.normal(k_g, (D,), jnp.float32)
    beta = 0.1 * jax.random.normal(k_be, (D,), jnp.float32)
    mean = 0.1 * jax.random.normal(k_m, (D,), jnp.float32)
    var = jnp.abs(1.0 + 0.1 * jax.random.normal(k_v, (D,), jnp.float32))
    return (w, bias, gamma, beta, mean, var)


def _reference(src, attn, p1, p2, eps=1e-5):
    """Pure-JAX reference with identical math (PyTorch eval-mode semantics)."""
    B, D, L = src.shape

    def conv_bn_relu(x, p):
        w, b, gamma, beta, mean, var = p
        K = w.shape[-1]
        P = K // 2
        xpad = jnp.pad(x, ((0, 0), (0, 0), (P, P)))
        out = jnp.zeros((B, D, L), jnp.float32)
        for k in range(K):
            out = out + jnp.einsum('oi,bil->bol', w[:, :, k], xpad[:, :, k:k + L])
        out = out + b[None, :, None]
        scale = (gamma / jnp.sqrt(var + eps))[None, :, None]
        out = (out - mean[None, :, None]) * scale + beta[None, :, None]
        return jnp.maximum(out, 0.0)

    y = jnp.einsum('bdl,blm->bdm', src, attn)
    h = conv_bn_relu(conv_bn_relu(y, p1), p2)
    return jnp.maximum(src + h, 0.0)


if __name__ == "__main__":
    B, D, L, K = 4, 32, 128, 3          # batch, d_model, seq_len, kernel_size

    key = jax.random.PRNGKey(0)
    k_src, k_attn, k_c1, k_c2 = jax.random.split(key, 4)

    src = jax.random.normal(k_src, (B, D, L), jnp.float32)
    attn = jax.nn.softmax(jax.random.normal(k_attn, (B, L, L), jnp.float32), axis=-1)

    p1 = _make_conv_bn_params(k_c1, D, K)
    p2 = _make_conv_bn_params(k_c2, D, K)

    ref = _reference(src, attn, p1, p2)

    # f32 path (tight tolerance)
    out = residual_graph_attention(src, attn, p1, p2)
    out = jax.block_until_ready(out)
    assert out.shape == (B, D, L)
    assert jnp.allclose(out, ref, rtol=2e-4, atol=2e-4), "f32 kernel mismatch vs reference"

    # bf16 matmul-input path (v6e/v7x fast path), looser tolerance
    out_bf16 = residual_graph_attention(src, attn, p1, p2, compute_dtype=jnp.bfloat16)
    out_bf16 = jax.block_until_ready(out_bf16)
    assert jnp.allclose(out_bf16, ref, rtol=5e-2, atol=5e-2), "bf16 kernel mismatch vs reference"

    print("KERNEL_OK")
</pallas_src>

<mosaic_0001>
module attributes {stable_mosaic.version = 11 : i64} {
  func.func @_rga_kernel(%arg0: i32, %arg1: memref<2x32x128xf32, #tpu.memory_space<vmem>>, %arg2: memref<2x128x128xf32, #tpu.memory_space<vmem>>, %arg3: memref<32x96xf32, #tpu.memory_space<vmem>>, %arg4: memref<32x1xf32, #tpu.memory_space<vmem>>, %arg5: memref<32x96xf32, #tpu.memory_space<vmem>>, %arg6: memref<32x1xf32, #tpu.memory_space<vmem>>, %arg7: memref<2x32x128xf32, #tpu.memory_space<vmem>>) attributes {dimension_semantics = [#tpu.dimension_semantics<parallel>], iteration_bounds = array<i64: 2>, scalar_prefetch = 0 : i64, scratch_operands = 0 : i64, tpu.core_type = #tpu.core_type<tc>, window_params = [{transform_indices = @transform_0, window_bounds = array<i64: 2, 32, 128>}, {transform_indices = @transform_1, window_bounds = array<i64: 2, 128, 128>}, {pipeline_mode = #tpu.pipeline_mode<synchronous>, transform_indices = @transform_2, window_bounds = array<i64: 32, 96>}, {pipeline_mode = #tpu.pipeline_mode<synchronous>, transform_indices = @transform_3, window_bounds = array<i64: 32, 1>}, {pipeline_mode = #tpu.pipeline_mode<synchronous>, transform_indices = @transform_4, window_bounds = array<i64: 32, 96>}, {pipeline_mode = #tpu.pipeline_mode<synchronous>, transform_indices = @transform_5, window_bounds = array<i64: 32, 1>}, {transform_indices = @transform_6, window_bounds = array<i64: 2, 32, 128>}]} {
    %c0 = arith.constant 0 : index
    %c0_0 = arith.constant 0 : index
    %c0_1 = arith.constant 0 : index
    %0 = vector.load %arg1[%c0, %c0_0, %c0_1] : memref<2x32x128xf32, #tpu.memory_space<vmem>>, vector<1x32x128xf32>
    %1 = vector.shape_cast %0 : vector<1x32x128xf32> to vector<32x128xf32>
    %c0_2 = arith.constant 0 : index
    %c0_3 = arith.constant 0 : index
    %c0_4 = arith.constant 0 : index
    %2 = vector.load %arg2[%c0_2, %c0_3, %c0_4] : memref<2x128x128xf32, #tpu.memory_space<vmem>>, vector<1x128x128xf32>
    %3 = vector.shape_cast %2 : vector<1x128x128xf32> to vector<128x128xf32>
    %cst = arith.constant dense<0.000000e+00> : vector<32x128xf32>
    %4 = tpu.matmul %1, %3, %cst {dimension_numbers = #tpu.dot_dimension_numbers<[1], [0], [0], [1], [0, 0, 1, 1], [], []>} : vector<32x128xf32>, vector<128x128xf32>, vector<32x128xf32> -> vector<32x128xf32>
    %c1 = arith.constant 1 : index
    %c0_5 = arith.constant 0 : index
    %c0_6 = arith.constant 0 : index
    %5 = vector.load %arg1[%c1, %c0_5, %c0_6] : memref<2x32x128xf32, #tpu.memory_space<vmem>>, vector<1x32x128xf32>
    %6 = vector.shape_cast %5 : vector<1x32x128xf32> to vector<32x128xf32>
    %c1_7 = arith.constant 1 : index
    %c0_8 = arith.constant 0 : index
    %c0_9 = arith.constant 0 : index
    %7 = vector.load %arg2[%c1_7, %c0_8, %c0_9] : memref<2x128x128xf32, #tpu.memory_space<vmem>>, vector<1x128x128xf32>
    %8 = vector.shape_cast %7 : vector<1x128x128xf32> to vector<128x128xf32>
    %cst_10 = arith.constant dense<0.000000e+00> : vector<32x128xf32>
    %9 = tpu.matmul %6, %8, %cst_10 {dimension_numbers = #tpu.dot_dimension_numbers<[1], [0], [0], [1], [0, 0, 1, 1], [], []>} : vector<32x128xf32>, vector<128x128xf32>, vector<32x128xf32> -> vector<32x128xf32>
    %10 = tpu.concatenate %4, %9 in 1 : vector<32x128xf32>, vector<32x128xf32> -> vector<32x256xf32>
    %11 = tpu.iota {dimensions = array<i32: 1>} : vector<32x256xi32>
    %c128_i32 = arith.constant 128 : i32
    %c0_i32 = arith.constant 0 : i32
    %12 = arith.cmpi eq, %c128_i32, %c0_i32 : i32
    %c1_i32 = arith.constant 1 : i32
    %13 = arith.select %12, %c1_i32, %c128_i32 : i32
    %14 = vector.broadcast %13 : i32 to vector<32x256xi32>
    %15 = arith.remsi %11, %14 : vector<32x256xi32>
    %c0_i32_11 = arith.constant 0 : i32
    %16 = vector.broadcast %c0_i32_11 : i32 to vector<32x256xi32>
    %17 = arith.cmpi ne, %15, %16 : vector<32x256xi32>
    %c0_i32_12 = arith.constant 0 : i32
    %18 = vector.broadcast %c0_i32_12 : i32 to vector<32x256xi32>
    %19 = arith.cmpi slt, %15, %18 : vector<32x256xi32>
    %c0_i32_13 = arith.constant 0 : i32
    %20 = arith.cmpi slt, %13, %c0_i32_13 : i32
    %21 = vector.broadcast %20 : i1 to vector<32x256xi1>
    %22 = vector.broadcast %21 : vector<32x256xi1> to vector<32x256xi1>
    %23 = arith.xori %19, %22 : vector<32x256xi1>
    %24 = arith.andi %23, %17 : vector<32x256xi1>
    %25 = vector.broadcast %13 : i32 to vector<32x256xi32>
    %26 = arith.addi %15, %25 : vector<32x256xi32>
    %27 = arith.select %24, %26, %15 : vector<32x256xi1>, vector<32x256xi32>
    %c1_i32_14 = arith.constant 1 : i32
    %28 = tpu.dynamic_rotate %10 by %c1_i32_14 dim 1 : vector<32x256xf32>, i32 -> vector<32x256xf32>
    %c1_i32_15 = arith.constant 1 : i32
    %29 = vector.broadcast %c1_i32_15 : i32 to vector<32x256xi32>
    %30 = arith.cmpi sge, %27, %29 : vector<32x256xi32>
    %c129_i32 = arith.constant 129 : i32
    %31 = vector.broadcast %c129_i32 : i32 to vector<32x256xi32>
    %32 = arith.cmpi slt, %27, %31 : vector<32x256xi32>
    %33 = arith.andi %30, %32 : vector<32x256xi1>
    %cst_16 = arith.constant 0.000000e+00 : f32
    %34 = vector.broadcast %cst_16 : f32 to vector<32x256xf32>
    %35 = arith.select %33, %28, %34 : vector<32x256xi1>, vector<32x256xf32>
    %c255_i32 = arith.constant 255 : i32
    %36 = tpu.dynamic_rotate %10 by %c255_i32 dim 1 : vector<32x256xf32>, i32 -> vector<32x256xf32>
    %c-1_i32 = arith.constant -1 : i32
    %37 = vector.broadcast %c-1_i32 : i32 to vector<32x256xi32>
    %38 = arith.cmpi sge, %27, %37 : vector<32x256xi32>
    %c127_i32 = arith.constant 127 : i32
    %39 = vector.broadcast %c127_i32 : i32 to vector<32x256xi32>
    %40 = arith.cmpi slt, %27, %39 : vector<32x256xi32>
    %41 = arith.andi %38, %40 : vector<32x256xi1>
    %cst_17 = arith.constant 0.000000e+00 : f32
    %42 = vector.broadcast %cst_17 : f32 to vector<32x256xf32>
    %43 = arith.select %41, %36, %42 : vector<32x256xi1>, vector<32x256xf32>
    %44 = tpu.concatenate %35, %10, %43 in 0 : vector<32x256xf32>, vector<32x256xf32>, vector<32x256xf32> -> vector<96x256xf32>
    %c0_18 = arith.constant 0 : index
    %c0_19 = arith.constant 0 : index
    %45 = vector.load %arg3[%c0_18, %c0_19] : memref<32x96xf32, #tpu.memory_space<vmem>>, vector<32x96xf32>
    %cst_20 = arith.constant dense<0.000000e+00> : vector<32x256xf32>
    %46 = tpu.matmul %45, %44, %cst_20 {dimension_numbers = #tpu.dot_dimension_numbers<[1], [0], [0], [1], [0, 0, 1, 1], [], []>} : vector<32x96xf32>, vector<96x256xf32>, vector<32x256xf32> -> vector<32x256xf32>
    %c0_21 = arith.constant 0 : index
    %c0_22 = arith.constant 0 : index
    %47 = vector.load %arg4[%c0_21, %c0_22] : memref<32x1xf32, #tpu.memory_space<vmem>>, vector<32x1xf32>
    %48 = vector.broadcast %47 : vector<32x1xf32> to vector<32x256xf32>
    %49 = arith.addf %46, %48 : vector<32x256xf32>
    %cst_23 = arith.constant 0.000000e+00 : f32
    %50 = vector.broadcast %cst_23 : f32 to vector<32x256xf32>
    %51 = arith.maximumf %49, %50 : vector<32x256xf32>
    %c1_i32_24 = arith.constant 1 : i32
    %52 = tpu.dynamic_rotate %51 by %c1_i32_24 dim 1 : vector<32x256xf32>, i32 -> vector<32x256xf32>
    %c1_i32_25 = arith.constant 1 : i32
    %53 = vector.broadcast %c1_i32_25 : i32 to vector<32x256xi32>
    %54 = arith.cmpi sge, %27, %53 : vector<32x256xi32>
    %c129_i32_26 = arith.constant 129 : i32
    %55 = vector.broadcast %c129_i32_26 : i32 to vector<32x256xi32>
    %56 = arith.cmpi slt, %27, %55 : vector<32x256xi32>
    %57 = arith.andi %54, %56 : vector<32x256xi1>
    %cst_27 = arith.constant 0.000000e+00 : f32
    %58 = vector.broadcast %cst_27 : f32 to vector<32x256xf32>
    %59 = arith.select %57, %52, %58 : vector<32x256xi1>, vector<32x256xf32>
    %c255_i32_28 = arith.constant 255 : i32
    %60 = tpu.dynamic_rotate %51 by %c255_i32_28 dim 1 : vector<32x256xf32>, i32 -> vector<32x256xf32>
    %c-1_i32_29 = arith.constant -1 : i32
    %61 = vector.broadcast %c-1_i32_29 : i32 to vector<32x256xi32>
    %62 = arith.cmpi sge, %27, %61 : vector<32x256xi32>
    %c127_i32_30 = arith.constant 127 : i32
    %63 = vector.broadcast %c127_i32_30 : i32 to vector<32x256xi32>
    %64 = arith.cmpi slt, %27, %63 : vector<32x256xi32>
    %65 = arith.andi %62, %64 : vector<32x256xi1>
    %cst_31 = arith.constant 0.000000e+00 : f32
    %66 = vector.broadcast %cst_31 : f32 to vector<32x256xf32>
    %67 = arith.select %65, %60, %66 : vector<32x256xi1>, vector<32x256xf32>
    %68 = tpu.concatenate %59, %51, %67 in 0 : vector<32x256xf32>, vector<32x256xf32>, vector<32x256xf32> -> vector<96x256xf32>
    %c0_32 = arith.constant 0 : index
    %c0_33 = arith.constant 0 : index
    %69 = vector.load %arg5[%c0_32, %c0_33] : memref<32x96xf32, #tpu.memory_space<vmem>>, vector<32x96xf32>
    %cst_34 = arith.constant dense<0.000000e+00> : vector<32x256xf32>
    %70 = tpu.matmul %69, %68, %cst_34 {dimension_numbers = #tpu.dot_dimension_numbers<[1], [0], [0], [1], [0, 0, 1, 1], [], []>} : vector<32x96xf32>, vector<96x256xf32>, vector<32x256xf32> -> vector<32x256xf32>
    %c0_35 = arith.constant 0 : index
    %c0_36 = arith.constant 0 : index
    %71 = vector.load %arg6[%c0_35, %c0_36] : memref<32x1xf32, #tpu.memory_space<vmem>>, vector<32x1xf32>
    %72 = vector.broadcast %71 : vector<32x1xf32> to vector<32x256xf32>
    %73 = arith.addf %70, %72 : vector<32x256xf32>
    %cst_37 = arith.constant 0.000000e+00 : f32
    %74 = vector.broadcast %cst_37 : f32 to vector<32x256xf32>
    %75 = arith.maximumf %73, %74 : vector<32x256xf32>
    %c0_38 = arith.constant 0 : index
    %c0_39 = arith.constant 0 : index
    %c0_40 = arith.constant 0 : index
    %76 = vector.load %arg1[%c0_38, %c0_39, %c0_40] : memref<2x32x128xf32, #tpu.memory_space<vmem>>, vector<1x32x128xf32>
    %77 = vector.shape_cast %76 : vector<1x32x128xf32> to vector<32x128xf32>
    %78 = vector.extract_strided_slice %75 {offsets = [0, 0], sizes = [32, 128], strides = [1, 1]} : vector<32x256xf32> to vector<32x128xf32>
    %79 = arith.addf %77, %78 : vector<32x128xf32>
    %cst_41 = arith.constant 0.000000e+00 : f32
    %80 = vector.broadcast %cst_41 : f32 to vector<32x128xf32>
    %81 = arith.maximumf %79, %80 : vector<32x128xf32>
    %c0_42 = arith.constant 0 : index
    %c0_43 = arith.constant 0 : index
    %c0_44 = arith.constant 0 : index
    %82 = vector.load %arg7[%c0_42, %c0_43, %c0_44] : memref<2x32x128xf32, #tpu.memory_space<vmem>>, vector<1x32x128xf32>
    %83 = vector.shape_cast %82 : vector<1x32x128xf32> to vector<32x128xf32>
    %84 = vector.shape_cast %81 : vector<32x128xf32> to vector<1x32x128xf32>
    tpu.vector_store %arg7[%c0_42, %c0_43, %c0_44], %84 {strides = array<i32>} : memref<2x32x128xf32, #tpu.memory_space<vmem>>, vector<1x32x128xf32>,
    %c1_45 = arith.constant 1 : index
    %c0_46 = arith.constant 0 : index
    %c0_47 = arith.constant 0 : index
    %85 = vector.load %arg1[%c1_45, %c0_46, %c0_47] : memref<2x32x128xf32, #tpu.memory_space<vmem>>, vector<1x32x128xf32>
    %86 = vector.shape_cast %85 : vector<1x32x128xf32> to vector<32x128xf32>
    %87 = vector.extract_strided_slice %75 {offsets = [0, 128], sizes = [32, 128], strides = [1, 1]} : vector<32x256xf32> to vector<32x128xf32>
    %88 = arith.addf %86, %87 : vector<32x128xf32>
    %cst_48 = arith.constant 0.000000e+00 : f32
    %89 = vector.broadcast %cst_48 : f32 to vector<32x128xf32>
    %90 = arith.maximumf %88, %89 : vector<32x128xf32>
    %c1_49 = arith.constant 1 : index
    %c0_50 = arith.constant 0 : index
    %c0_51 = arith.constant 0 : index
    %91 = vector.load %arg7[%c1_49, %c0_50, %c0_51] : memref<2x32x128xf32, #tpu.memory_space<vmem>>, vector<1x32x128xf32>
    %92 = vector.shape_cast %91 : vector<1x32x128xf32> to vector<32x128xf32>
    %93 = vector.shape_cast %90 : vector<32x128xf32> to vector<1x32x128xf32>
    tpu.vector_store %arg7[%c1_49, %c0_50, %c0_51], %93 {strides = array<i32>} : memref<2x32x128xf32, #tpu.memory_space<vmem>>, vector<1x32x128xf32>,
    return
  }
  func.func @transform_0(%arg0: i32) -> (i32, i32, i32) {
    %c0_i32 = arith.constant 0 : i32
    %c0_i32_0 = arith.constant 0 : i32
    %c0_i32_1 = arith.constant 0 : i32
    return %arg0, %c0_i32, %c0_i32_0 : i32, i32, i32
  }
  func.func @transform_1(%arg0: i32) -> (i32, i32, i32) {
    %c0_i32 = arith.constant 0 : i32
    %c0_i32_0 = arith.constant 0 : i32
    %c0_i32_1 = arith.constant 0 : i32
    return %arg0, %c0_i32, %c0_i32_0 : i32, i32, i32
  }
  func.func @transform_2(%arg0: i32) -> (i32, i32) {
    %c0_i32 = arith.constant 0 : i32
    %c0_i32_0 = arith.constant 0 : i32
    %c0_i32_1 = arith.constant 0 : i32
    return %c0_i32, %c0_i32_0 : i32, i32
  }
  func.func @transform_3(%arg0: i32) -> (i32, i32) {
    %c0_i32 = arith.constant 0 : i32
    %c0_i32_0 = arith.constant 0 : i32
    %c0_i32_1 = arith.constant 0 : i32
    return %c0_i32, %c0_i32_0 : i32, i32
  }
  func.func @transform_4(%arg0: i32) -> (i32, i32) {
    %c0_i32 = arith.constant 0 : i32
    %c0_i32_0 = arith.constant 0 : i32
    %c0_i32_1 = arith.constant 0 : i32
    return %c0_i32, %c0_i32_0 : i32, i32
  }
  func.func @transform_5(%arg0: i32) -> (i32, i32) {
    %c0_i32 = arith.constant 0 : i32
    %c0_i32_0 = arith.constant 0 : i32
    %c0_i32_1 = arith.constant 0 : i32
    return %c0_i32, %c0_i32_0 : i32, i32
  }
  func.func @transform_6(%arg0: i32) -> (i32, i32, i32) {
    %c0_i32 = arith.constant 0 : i32
    %c0_i32_0 = arith.constant 0 : i32
    %c0_i32_1 = arith.constant 0 : i32
    return %arg0, %c0_i32, %c0_i32_0 : i32, i32, i32
  }
}

</mosaic_0001>

<llo_original>
// kernel: tpu_custom_call.1
$region0: #{tpu_custom_call.1}
  #allocation0 [shape = 'u32[]', space=smem, size = 0x4, offset = 0x4, fixed_abs, tag = 'smem constant byte address 0x4 - core index']
  #allocation1 [shape = 'u32[72,128]{1,0:T(1,128)}', space=vmem, size = 0x9000, scoped, tag = 'internal scratch']
  %s0 = inlined_call_operand.hbm [shape: f32[4,32,128], index: 0, kind: input, shape index: {}]
  %s1 = inlined_call_operand.hbm [shape: f32[4,128,128], index: 1, kind: input, shape index: {}]
  %s2 = inlined_call_operand.vmem [shape: f32[32,96], index: 2, kind: input, shape index: {}]
  %s3 = inlined_call_operand.vmem [shape: f32[32,1], index: 3, kind: input, shape index: {}]
  %s4 = inlined_call_operand.vmem [shape: f32[32,96], index: 4, kind: input, shape index: {}]
  %s5 = inlined_call_operand.vmem [shape: f32[32,1], index: 5, kind: input, shape index: {}]
  %s6 = inlined_call_operand.hbm [shape: f32[4,32,128], index: 6, kind: output, shape index: {}]
  %s7 = sld [smem:[#allocation0]]
  $region65: #{tpu_custom_call.1} parent=0
    _
  %s9 = ssub.s32 1, %s7
  %s10 = scalar_select 0, %s9, %s7
  $region1: #{tpu_custom_call.1} parent=0
    #allocation2 [shape = 'u8[65536]{0}', space=vmem, size = 0x10000, scoped, tag = 'input window, operand 0']
    #allocation3 [shape = 's32[2]{0}', space=sflag, size = 0x8, scoped, tag = 'scoped memory for tpu_custom_call.1']
    #allocation4 [shape = 's32[2]{0}', space=sflag, size = 0x8, scoped, tag = 'scoped memory for tpu_custom_call.1']
    #allocation5 [shape = 'u8[262144]{0}', space=vmem, size = 0x40000, scoped, tag = 'input window, operand 1']
    #allocation6 [shape = 's32[2]{0}', space=sflag, size = 0x8, scoped, tag = 'scoped memory for tpu_custom_call.1']
    #allocation7 [shape = 'u8[65536]{0}', space=vmem, size = 0x10000, scoped, tag = 'output window, operand 0']
    %11 = vsyncpa [#allocation3], 0
    %s12 = scalar_lea.sflag [#allocation3], 1
    %13 = vsyncpa %s12, 0
    %14 = vsyncpa [#allocation6], 0
    %s15 = scalar_lea.sflag [#allocation6], 1
    %16 = vsyncpa %s15, 0
    %17 = vsyncpa [#allocation4], 0
    %s18 = scalar_lea.sflag [#allocation4], 1
    %19 = vsyncpa %s18, 0
    loop: start=0, step=1, limit=4
    $region2: #{tpu_custom_call.1} parent=1 // loop_pre_header
      _
    $region3: #{tpu_custom_call.1} parent=1 // loop_header
      %s21 = sphi 0, %s25
      %p22 = scmp.ge.s32.totalorder %s21, 4
      %s31 = sphi 0, %s33
      %s34 = sphi 0, %s31
      %s35 = sphi 0, %s34
      %s51 = sphi 0, %s35
      %s57 = sphi 0, %s59
      %s60 = sphi 0, %s57
      %s61 = sphi 0, %s60
      %s77 = sphi 0, %s61
      %s81 = sphi 0, %s81
      %s83 = sphi 0, %s81
      %s84 = sphi 0, %s83
      %s98 = sphi 0, %s84
      %s102 = sphi 0, %s102
      %s104 = sphi 0, %s102
      %s105 = sphi 0, %s104
      %s119 = sphi 0, %s105
      %s123 = sphi 0, %s123
      %s125 = sphi 0, %s123
      %s126 = sphi 0, %s125
      %s140 = sphi 0, %s126
      %s144 = sphi 0, %s144
      %s146 = sphi 0, %s144
      %s147 = sphi 0, %s146
      %s161 = sphi 0, %s147
      %s167 = sphi 0, %s169
      %s170 = sphi 0, %s167
      %s171 = sphi 0, %s170
      %s187 = sphi 0, %s171
    $region4: #{tpu_custom_call.1} parent=1 // loop_header_branch
      %24 = sbr.rel (%p22) target = $region8
    $region5: #{tpu_custom_call.1} parent=1 // loop_body
      %s26 = ssub.s32 %s21, 1
      %s27 = ssub.s32 %s21, 2
      %s28 = sadd.s32 %s21, 1
      %s29 = ssub.s32 %s21, %s28
      %p30 = scmp.eq.s32.totalorder %s29, 0
      %s32 = sadd.s32 %s31, 1
      %s33 = scalar_select %p30, %s31, %s32
      %p36 = pneg %p30
      %p37 = scmp.eq.s32.totalorder %s21, 1
      %p38 = por %p36, %p37
      %p39 = scmp.ne.s32.totalorder %s31, %s34
      %p40 = scmp.eq.s32.totalorder %s21, 0
      %p41 = por %p39, %p40
      %p42 = scmp.ne.s32.totalorder %s31, %s34
      %p43 = scmp.eq.s32.totalorder %s26, 1
      %p44 = por %p42, %p43
      %p45 = scmp.ne.s32.totalorder %s34, %s35
      %p46 = scmp.eq.s32.totalorder %s26, 0
      %p47 = por %p45, %p46
      %p48 = scmp.ne.s32.totalorder %s34, %s35
      %p49 = scmp.eq.s32.totalorder %s27, 1
      %p50 = por %p48, %p49
      %p52 = scmp.ne.s32.totalorder %s35, %s51
      %p53 = scmp.eq.s32.totalorder %s27, 0
      %p54 = por %p52, %p53
      %s55 = ssub.s32 %s21, %s28
      %p56 = scmp.eq.s32.totalorder %s55, 0
      %s58 = sadd.s32 %s57, 1
      %s59 = scalar_select %p56, %s57, %s58
      %p62 = pneg %p56
      %p63 = scmp.eq.s32.totalorder %s21, 1
      %p64 = por %p62, %p63
      %p65 = scmp.ne.s32.totalorder %s57, %s60
      %p66 = scmp.eq.s32.totalorder %s21, 0
      %p67 = por %p65, %p66
      %p68 = scmp.ne.s32.totalorder %s57, %s60
      %p69 = scmp.eq.s32.totalorder %s26, 1
      %p70 = por %p68, %p69
      %p71 = scmp.ne.s32.totalorder %s60, %s61
      %p72 = scmp.eq.s32.totalorder %s26, 0
      %p73 = por %p71, %p72
      %p74 = scmp.ne.s32.totalorder %s60, %s61
      %p75 = scmp.eq.s32.totalorder %s27, 1
      %p76 = por %p74, %p75
      %p78 = scmp.ne.s32.totalorder %s61, %s77
      %p79 = scmp.eq.s32.totalorder %s27, 0
      %p80 = por %p78, %p79
      %s82 = sadd.s32 %s81, 1
      %p85 = scmp.eq.s32.totalorder %s21, 1
      %p86 = scmp.ne.s32.totalorder %s81, %s83
      %p87 = scmp.eq.s32.totalorder %s21, 0
      %p88 = por %p86, %p87
      %p89 = scmp.ne.s32.totalorder %s81, %s83
      %p90 = scmp.eq.s32.totalorder %s26, 1
      %p91 = por %p89, %p90
      %p92 = scmp.ne.s32.totalorder %s83, %s84
      %p93 = scmp.eq.s32.totalorder %s26, 0
      %p94 = por %p92, %p93
      %p95 = scmp.ne.s32.totalorder %s83, %s84
      %p96 = scmp.eq.s32.totalorder %s27, 1
      %p97 = por %p95, %p96
      %p99 = scmp.ne.s32.totalorder %s84, %s98
      %p100 = scmp.eq.s32.totalorder %s27, 0
      %p101 = por %p99, %p100
      %s103 = sadd.s32 %s102, 1
      %p106 = scmp.eq.s32.totalorder %s21, 1
      %p107 = scmp.ne.s32.totalorder %s102, %s104
      %p108 = scmp.eq.s32.totalorder %s21, 0
      %p109 = por %p107, %p108
      %p110 = scmp.ne.s32.totalorder %s102, %s104
      %p111 = scmp.eq.s32.totalorder %s26, 1
      %p112 = por %p110, %p111
      %p113 = scmp.ne.s32.totalorder %s104, %s105
      %p114 = scmp.eq.s32.totalorder %s26, 0
      %p115 = por %p113, %p114
      %p116 = scmp.ne.s32.totalorder %s104, %s105
      %p117 = scmp.eq.s32.totalorder %s27, 1
      %p118 = por %p116, %p117
      %p120 = scmp.ne.s32.totalorder %s105, %s119
      %p121 = scmp.eq.s32.totalorder %s27, 0
      %p122 = por %p120, %p121
      %s124 = sadd.s32 %s123, 1
      %p127 = scmp.eq.s32.totalorder %s21, 1
      %p128 = scmp.ne.s32.totalorder %s123, %s125
      %p129 = scmp.eq.s32.totalorder %s21, 0
      %p130 = por %p128, %p129
      %p131 = scmp.ne.s32.totalorder %s123, %s125
      %p132 = scmp.eq.s32.totalorder %s26, 1
      %p133 = por %p131, %p132
      %p134 = scmp.ne.s32.totalorder %s125, %s126
      %p135 = scmp.eq.s32.totalorder %s26, 0
      %p136 = por %p134, %p135
      %p137 = scmp.ne.s32.totalorder %s125, %s126
      %p138 = scmp.eq.s32.totalorder %s27, 1
      %p139 = por %p137, %p138
      %p141 = scmp.ne.s32.totalorder %s126, %s140
      %p142 = scmp.eq.s32.totalorder %s27, 0
      %p143 = por %p141, %p142
      %s145 = sadd.s32 %s144, 1
      %p148 = scmp.eq.s32.totalorder %s21, 1
      %p149 = scmp.ne.s32.totalorder %s144, %s146
      %p150 = scmp.eq.s32.totalorder %s21, 0
      %p151 = por %p149, %p150
      %p152 = scmp.ne.s32.totalorder %s144, %s146
      %p153 = scmp.eq.s32.totalorder %s26, 1
      %p154 = por %p152, %p153
      %p155 = scmp.ne.s32.totalorder %s146, %s147
      %p156 = scmp.eq.s32.totalorder %s26, 0
      %p157 = por %p155, %p156
      %p158 = scmp.ne.s32.totalorder %s146, %s147
      %p159 = scmp.eq.s32.totalorder %s27, 1
      %p160 = por %p158, %p159
      %p162 = scmp.ne.s32.totalorder %s147, %s161
      %p163 = scmp.eq.s32.totalorder %s27, 0
      %p164 = por %p162, %p163
      %s165 = ssub.s32 %s21, %s28
      %p166 = scmp.eq.s32.totalorder %s165, 0
      %s168 = sadd.s32 %s167, 1
      %s169 = scalar_select %p166, %s167, %s168
      %p172 = pneg %p166
      %p173 = scmp.eq.s32.totalorder %s21, 1
      %p174 = por %p172, %p173
      %p175 = scmp.ne.s32.totalorder %s167, %s170
      %p176 = scmp.eq.s32.totalorder %s21, 0
      %p177 = por %p175, %p176
      %p178 = scmp.ne.s32.totalorder %s167, %s170
      %p179 = scmp.eq.s32.totalorder %s26, 1
      %p180 = por %p178, %p179
      %p181 = scmp.ne.s32.totalorder %s170, %s171
      %p182 = scmp.eq.s32.totalorder %s26, 0
      %p183 = por %p181, %p182
      %p184 = scmp.ne.s32.totalorder %s170, %s171
      %p185 = scmp.eq.s32.totalorder %s27, 1
      %p186 = por %p184, %p185
      %p188 = scmp.ne.s32.totalorder %s171, %s187
      %p189 = scmp.eq.s32.totalorder %s27, 0
      %p190 = por %p188, %p189
      %p191 = scmp.le.s32.totalorder 1, %s21
      %p192 = scmp.lt.s32.totalorder %s21, 3
      %p193 = pnand %p191, %p192
      %p194 = pneg %p193
      // Predicated region
      $region9: #{tpu_custom_call.1} parent=5 // pred_check
        _
      $region10: #{tpu_custom_call.1} parent=5 // pred_check_branch
        %196 = sbr.rel (%p193) target = $region12
      $region11: #{tpu_custom_call.1} parent=5 // pred_region
        %s197 = ssub.s32 %s21, 1
        // Predicated region
        $region13: #{tpu_custom_call.1} parent=11 // pred_check
          %p198 = pneg %p94
        $region14: #{tpu_custom_call.1} parent=11 // pred_check_branch
          %200 = sbr.rel (%p198) target = $region16
        $region15: #{tpu_custom_call.1} parent=11 // pred_region
          _
        $region16: #{tpu_custom_call.1} parent=11 // pred_fallthru
          _
        // Predicated region
        $region17: #{tpu_custom_call.1} parent=11 // pred_check
          %p201 = pneg %p115
        $region18: #{tpu_custom_call.1} parent=11 // pred_check_branch
          %203 = sbr.rel (%p201) target = $region20
        $region19: #{tpu_custom_call.1} parent=11 // pred_region
          _
        $region20: #{tpu_custom_call.1} parent=11 // pred_fallthru
          _
        // Predicated region
        $region21: #{tpu_custom_call.1} parent=11 // pred_check
          %p204 = pneg %p136
        $region22: #{tpu_custom_call.1} parent=11 // pred_check_branch
          %206 = sbr.rel (%p204) target = $region24
        $region23: #{tpu_custom_call.1} parent=11 // pred_region
          _
        $region24: #{tpu_custom_call.1} parent=11 // pred_fallthru
          _
        // Predicated region
        $region25: #{tpu_custom_call.1} parent=11 // pred_check
          %p207 = pneg %p157
        $region26: #{tpu_custom_call.1} parent=11 // pred_check_branch
          %209 = sbr.rel (%p207) target = $region28
        $region27: #{tpu_custom_call.1} parent=11 // pred_region
          _
        $region28: #{tpu_custom_call.1} parent=11 // pred_fallthru
          _
      $region12: #{tpu_custom_call.1} parent=5 // pred_fallthru
        _
      %p210 = scmp.lt.s32.totalorder %s21, 2
      // Predicated region
      $region29: #{tpu_custom_call.1} parent=5 // pred_check
        %p211 = pneg %p210
      $region30: #{tpu_custom_call.1} parent=5 // pred_check_branch
        %213 = sbr.rel (%p211) target = $region32
      $region31: #{tpu_custom_call.1} parent=5 // pred_region
        // Predicated region
        $region33: #{tpu_custom_call.1} parent=31 // pred_check
          %p214 = pneg %p41
        $region34: #{tpu_custom_call.1} parent=31 // pred_check_branch
          %216 = sbr.rel (%p214) target = $region36
        $region35: #{tpu_custom_call.1} parent=31 // pred_region
          %s217 = sand.u32 %s31, 1
          %s218 = scalar_lea.sflag [#allocation3], %s217
          %s219 = sand.u32 %s31, 1
          %s220 = smul.addr %s219, 64
          %s221 = scalar_lea.vmem [#allocation2], %s220
          %s222 = smul.u32 2, %s21
          %224 = vsyncadd %s218, 0
          %s225 = smul.addr %s222, 4
          %s226 = smul.addr %s225, 8
          %s227 = scalar_lea.hbm %s0, %s226
          %s228 = sshll.u32 %s227, 4
          %s229 = int_to_ptr.hbm [resolvable:$true] %s228
          %s230 = sshll.u32 %s221, 4
          %s231 = int_to_ptr.vmem [resolvable:$true] %s230
          %236 = dma.hbm_to_vmem [thread:$0]  %s229, 1024, %s231, %s218, 128, 128, 8
        $region36: #{tpu_custom_call.1} parent=31 // pred_fallthru
          _
        // Predicated region
        $region37: #{tpu_custom_call.1} parent=31 // pred_check
          %p237 = pneg %p67
        $region38: #{tpu_custom_call.1} parent=31 // pred_check_branch
          %239 = sbr.rel (%p237) target = $region40
        $region39: #{tpu_custom_call.1} parent=31 // pred_region
          %s240 = sand.u32 %s57, 1
          %s241 = scalar_lea.sflag [#allocation6], %s240
          %s242 = sand.u32 %s57, 1
          %s243 = smul.addr %s242, 256
          %s244 = scalar_lea.vmem [#allocation5], %s243
          %s245 = smul.u32 2, %s21
          %247 = vsyncadd %s241, 0
          %s248 = smul.addr %s245, 16
          %s249 = smul.addr %s248, 8
          %s250 = scalar_lea.hbm %s1, %s249
          %s251 = sshll.u32 %s250, 4
          %s252 = int_to_ptr.hbm [resolvable:$true] %s251
          %s253 = sshll.u32 %s244, 4
          %s254 = int_to_ptr.vmem [resolvable:$true] %s253
          %259 = dma.hbm_to_vmem [thread:$0]  %s252, 4096, %s254, %s241, 128, 128, 8
        $region40: #{tpu_custom_call.1} parent=31 // pred_fallthru
          _
      $region32: #{tpu_custom_call.1} parent=5 // pred_fallthru
        _
      %p260 = scmp.le.s32.totalorder 1, %s21
      %p261 = scmp.lt.s32.totalorder %s21, 3
      %p262 = pnand %p260, %p261
      %p263 = pneg %p262
      // Predicated region
      $region41: #{tpu_custom_call.1} parent=5 // pred_check
        _
      $region42: #{tpu_custom_call.1} parent=5 // pred_check_branch
        %265 = sbr.rel (%p262) target = $region44
      $region43: #{tpu_custom_call.1} parent=5 // pred_region
        %s266 = ssub.s32 %s21, 1
        %s267 = sand.u32 %s34, 1
        %s268 = scalar_lea.sflag [#allocation3], %s267
        %s269 = sand.u32 %s34, 1
        %s270 = smul.addr %s269, 64
        %s271 = scalar_lea.vmem [#allocation2], %s270
        // Predicated region
        $region45: #{tpu_custom_call.1} parent=43 // pred_check
          %p272 = pneg %p47
        $region46: #{tpu_custom_call.1} parent=43 // pred_check_branch
          %274 = sbr.rel (%p272) target = $region48
        $region47: #{tpu_custom_call.1} parent=43 // pred_region
          %276 = dma.done %s268, 1024
        $region48: #{tpu_custom_call.1} parent=43 // pred_fallthru
          _
        %s277 = sand.u32 %s60, 1
        %s278 = scalar_lea.sflag [#allocation6], %s277
        %s279 = sand.u32 %s60, 1
        %s280 = smul.addr %s279, 256
        %s281 = scalar_lea.vmem [#allocation5], %s280
        // Predicated region
        $region49: #{tpu_custom_call.1} parent=43 // pred_check
          %p282 = pneg %p73
        $region50: #{tpu_custom_call.1} parent=43 // pred_check_branch
          %284 = sbr.rel (%p282) target = $region52
        $region51: #{tpu_custom_call.1} parent=43 // pred_region
          %286 = dma.done %s278, 4096
        $region52: #{tpu_custom_call.1} parent=43 // pred_fallthru
          _
        %s287 = sand.u32 %s34, 1
        %s288 = scalar_lea.sflag [#allocation3], %s287
        %s289 = sand.u32 %s34, 1
        %s290 = smul.addr %s289, 64
        %s291 = scalar_lea.vmem [#allocation2], %s290
        %p292 = pneg %p47
        %p293 = pneg %p44
        %s294 = sand.u32 %s60, 1
        %s295 = scalar_lea.sflag [#allocation6], %s294
        %s296 = sand.u32 %s60, 1
        %s297 = smul.addr %s296, 256
        %s298 = scalar_lea.vmem [#allocation5], %s297
        %p299 = pneg %p73
        %p300 = pneg %p70
        %p301 = pneg %p94
        %p302 = pneg %p91
        %p303 = pneg %p115
        %p304 = pneg %p112
        %p305 = pneg %p136
        %p306 = pneg %p133
        %p307 = pneg %p157
        %p308 = pneg %p154
        %p309 = pneg %p183
        %p310 = pneg %p180
        %s311 = sand.u32 %s170, 1
        %s312 = scalar_lea.sflag [#allocation4], %s311
        %s313 = sand.u32 %s170, 1
        %s314 = smul.addr %s313, 64
        %s315 = scalar_lea.vmem [#allocation7], %s314
        %s316 = smul.u32 2, %s26
        %s317 = smul.u32 2, %s26
        %s318 = smul.u32 2, %s26
        %v319 = vld [vmem:[%s271] sm:$0xff]
        %v320 = vld [vmem:[%s271 + $0x8] sm:$0xff]
        %v321 = vld [vmem:[%s271 + $0x10] sm:$0xff]
        %v322 = vld [vmem:[%s271 + $0x18] sm:$0xff]
        %v323 = vld [vmem:[%s281] sm:$0xff]
        %v324 = vld [vmem:[%s281 + $0x8] sm:$0xff]
        %v325 = vld [vmem:[%s281 + $0x10] sm:$0xff]
        %v326 = vld [vmem:[%s281 + $0x18] sm:$0xff]
        %v327 = vld [vmem:[%s281 + $0x20] sm:$0xff]
        %v328 = vld [vmem:[%s281 + $0x28] sm:$0xff]
        %v329 = vld [vmem:[%s281 + $0x30] sm:$0xff]
        %v330 = vld [vmem:[%s281 + $0x38] sm:$0xff]
        %v331 = vld [vmem:[%s281 + $0x40] sm:$0xff]
        %v332 = vld [vmem:[%s281 + $0x48] sm:$0xff]
        %v333 = vld [vmem:[%s281 + $0x50] sm:$0xff]
        %v334 = vld [vmem:[%s281 + $0x58] sm:$0xff]
        %v335 = vld [vmem:[%s281 + $0x60] sm:$0xff]
        %v336 = vld [vmem:[%s281 + $0x68] sm:$0xff]
        %v337 = vld [vmem:[%s281 + $0x70] sm:$0xff]
        %v338 = vld [vmem:[%s281 + $0x78] sm:$0xff]
        %339 = vmatpush.msra.mxu0 %v338
        %340 = vmatpush.msra.mxu0 %v337
        %341 = vmatpush.msra.mxu0 %v336
        %342 = vmatpush.msra.mxu0 %v335
        %343 = vmatpush.msra.mxu0 %v334
        %344 = vmatpush.msra.mxu0 %v333
        %345 = vmatpush.msra.mxu0 %v332
        %346 = vmatpush.msra.mxu0 %v331
        %347 = vmatpush.msra.mxu0 %v330
        %348 = vmatpush.msra.mxu0 %v329
        %349 = vmatpush.msra.mxu0 %v328
        %350 = vmatpush.msra.mxu0 %v327
        %351 = vmatpush.msra.mxu0 %v326
        %352 = vmatpush.msra.mxu0 %v325
        %353 = vmatpush.msra.mxu0 %v324
        %354 = vmatpush.msra.mxu0 %v323
        %355 = vmatmul.f32.gmra.mxu0 %v319
        %v356 = vpop.f32.mrf.mxu0
        %v357 = vadd.f32 0.0, %v356
        %358 = vmatmul.f32.gmra.mxu0 %v320
        %v359 = vpop.f32.mrf.mxu0
        %v360 = vadd.f32 0.0, %v359
        %361 = vmatmul.f32.gmra.mxu0 %v321
        %v362 = vpop.f32.mrf.mxu0
        %v363 = vadd.f32 0.0, %v362
        %364 = vmatmul.f32.gmra.mxu0 %v322
        %v365 = vpop.f32.mrf.mxu0
        %v366 = vadd.f32 0.0, %v365
        %367 = vdwg.mxu0
        %s368 = scalar_lea.vmem %s271, 32 [#allocation2]
        %v369 = vld [vmem:[%s368] sm:$0xff]
        %v370 = vld [vmem:[%s368 + $0x8] sm:$0xff]
        %v371 = vld [vmem:[%s368 + $0x10] sm:$0xff]
        %v372 = vld [vmem:[%s368 + $0x18] sm:$0xff]
        %s373 = scalar_lea.vmem %s281, 128 [#allocation5]
        %v374 = vld [vmem:[%s373] sm:$0xff]
        %v375 = vld [vmem:[%s373 + $0x8] sm:$0xff]
        %v376 = vld [vmem:[%s373 + $0x10] sm:$0xff]
        %v377 = vld [vmem:[%s373 + $0x18] sm:$0xff]
        %v378 = vld [vmem:[%s373 + $0x20] sm:$0xff]
        %v379 = vld [vmem:[%s373 + $0x28] sm:$0xff]
        %v380 = vld [vmem:[%s373 + $0x30] sm:$0xff]
        %v381 = vld [vmem:[%s373 + $0x38] sm:$0xff]
        %v382 = vld [vmem:[%s373 + $0x40] sm:$0xff]
        %v383 = vld [vmem:[%s373 + $0x48] sm:$0xff]
        %v384 = vld [vmem:[%s373 + $0x50] sm:$0xff]
        %v385 = vld [vmem:[%s373 + $0x58] sm:$0xff]
        %v386 = vld [vmem:[%s373 + $0x60] sm:$0xff]
        %v387 = vld [vmem:[%s373 + $0x68] sm:$0xff]
        %v388 = vld [vmem:[%s373 + $0x70] sm:$0xff]
        %v389 = vld [vmem:[%s373 + $0x78] sm:$0xff]
        %390 = vmatpush.msra.mxu0 %v389
        %391 = vmatpush.msra.mxu0 %v388
        %392 = vmatpush.msra.mxu0 %v387
        %393 = vmatpush.msra.mxu0 %v386
        %394 = vmatpush.msra.mxu0 %v385
        %395 = vmatpush.msra.mxu0 %v384
        %396 = vmatpush.msra.mxu0 %v383
        %397 = vmatpush.msra.mxu0 %v382
        %398 = vmatpush.msra.mxu0 %v381
        %399 = vmatpush.msra.mxu0 %v380
        %400 = vmatpush.msra.mxu0 %v379
        %401 = vmatpush.msra.mxu0 %v378
        %402 = vmatpush.msra.mxu0 %v377
        %403 = vmatpush.msra.mxu0 %v376
        %404 = vmatpush.msra.mxu0 %v375
        %405 = vmatpush.msra.mxu0 %v374
        %406 = vmatmul.f32.gmra.mxu0 %v369
        %v407 = vpop.f32.mrf.mxu0
        %v408 = vadd.f32 0.0, %v407
        %409 = vmatmul.f32.gmra.mxu0 %v370
        %v410 = vpop.f32.mrf.mxu0
        %v411 = vadd.f32 0.0, %v410
        %412 = vmatmul.f32.gmra.mxu0 %v371
        %v413 = vpop.f32.mrf.mxu0
        %v414 = vadd.f32 0.0, %v413
        %415 = vmatmul.f32.gmra.mxu0 %v372
        %v416 = vpop.f32.mrf.mxu0
        %v417 = vadd.f32 0.0, %v416
        %418 = vdwg.mxu0
        %v419 = vlaneseq
        %v420 = vand.u32 %v419, 127
        %v421 = vadd.s32 %v420, 128
        %vm422 = vcmp.lt.s32.totalorder %v420, 0
        %v423 = vsub.s32 0, %v420
        %v424 = vsel %vm422, %v423, %v420
        %v425 = vshrl.u32 %v424, 7
        %v426 = vand.u32 %v424, 127
        %v427 = vsub.s32 0, %v426
        %v428 = vsel %vm422, %v427, %v426
        %vm429 = vcmp.lt.s32.totalorder %v421, 0
        %v430 = vsub.s32 0, %v421
        %v431 = vsel %vm429, %v430, %v421
        %v432 = vshrl.u32 %v431, 7
        %v433 = vand.u32 %v431, 127
        %v434 = vsub.s32 0, %v433
        %v435 = vsel %vm429, %v434, %v433
        %vm436 = vcmp.ne.s32.totalorder %v428, 0
        %vm437 = vcmp.ne.s32.totalorder %v435, 0
        %vm438 = vcmp.lt.s32.totalorder %v428, 0
        %vm439 = vcmp.lt.s32.totalorder %v435, 0
        %vm440 = vmand %vm438, %vm436
        %vm441 = vmand %vm439, %vm437
        %v442 = vadd.s32 %v428, 128
        %v443 = vadd.s32 %v435, 128
        %v444 = vsel %vm440, %v442, %v428
        %v445 = vsel %vm441, %v443, %v435
        %446 = vrot.lane.b32.xlu0 %v357, 1
        %v447 = vpop.permute.xlu0 %446
        %448 = vrot.lane.b32.xlu0 %v360, 1
        %v449 = vpop.permute.xlu0 %448
        %450 = vrot.lane.b32.xlu0 %v363, 1
        %v451 = vpop.permute.xlu0 %450
        %452 = vrot.lane.b32.xlu0 %v366, 1
        %v453 = vpop.permute.xlu0 %452
        %454 = vrot.lane.b32.xlu0 %v408, 1
        %v455 = vpop.permute.xlu0 %454
        %456 = vrot.lane.b32.xlu0 %v411, 1
        %v457 = vpop.permute.xlu0 %456
        %458 = vrot.lane.b32.xlu0 %v414, 1
        %v459 = vpop.permute.xlu0 %458
        %460 = vrot.lane.b32.xlu0 %v417, 1
        %v461 = vpop.permute.xlu0 %460
        %vm462 = vcmp.lt.s32.totalorder %v420, 1
        %v463 = vsel %vm462, %v447, %v455
        %v464 = vsel %vm462, %v449, %v457
        %v465 = vsel %vm462, %v451, %v459
        %v466 = vsel %vm462, %v453, %v461
        %v467 = vsel %vm462, %v455, %v447
        %v468 = vsel %vm462, %v457, %v449
        %v469 = vsel %vm462, %v459, %v451
        %v470 = vsel %vm462, %v461, %v453
        %vm471 = vcmp.ge.s32.totalorder %v444, 1
        %vm472 = vcmp.ge.s32.totalorder %v445, 1
        %vm473 = vcmp.lt.s32.totalorder %v444, 129
        %vm474 = vcmp.lt.s32.totalorder %v445, 129
        %vm475 = vmand %vm471, %vm473
        %vm476 = vmand %vm472, %vm474
        %v477 = vsel %vm475, %v467, 0.0
        %v478 = vsel %vm476, %v463, 0.0
        %v479 = vsel %vm475, %v468, 0.0
        %v480 = vsel %vm476, %v464, 0.0
        %v481 = vsel %vm475, %v469, 0.0
        %v482 = vsel %vm476, %v465, 0.0
        %v483 = vsel %vm475, %v470, 0.0
        %v484 = vsel %vm476, %v466, 0.0
        %485 = vrot.lane.b32.xlu0 %v357, 127
        %v486 = vpop.permute.xlu0 %485
        %487 = vrot.lane.b32.xlu0 %v360, 127
        %v488 = vpop.permute.xlu0 %487
        %489 = vrot.lane.b32.xlu0 %v363, 127
        %v490 = vpop.permute.xlu0 %489
        %491 = vrot.lane.b32.xlu0 %v366, 127
        %v492 = vpop.permute.xlu0 %491
        %493 = vrot.lane.b32.xlu0 %v408, 127
        %v494 = vpop.permute.xlu0 %493
        %495 = vrot.lane.b32.xlu0 %v411, 127
        %v496 = vpop.permute.xlu0 %495
        %497 = vrot.lane.b32.xlu0 %v414, 127
        %v498 = vpop.permute.xlu0 %497
        %499 = vrot.lane.b32.xlu0 %v417, 127
        %v500 = vpop.permute.xlu0 %499
        %vm501 = vcmp.lt.s32.totalorder %v420, 127
        %v502 = vsel %vm501, %v486, %v494
        %v503 = vsel %vm501, %v488, %v496
        %v504 = vsel %vm501, %v490, %v498
        %v505 = vsel %vm501, %v492, %v500
        %v506 = vsel %vm501, %v494, %v486
        %v507 = vsel %vm501, %v496, %v488
        %v508 = vsel %vm501, %v498, %v490
        %v509 = vsel %vm501, %v500, %v492
        %vm510 = vcmp.ge.s32.totalorder %v444, 4294967295
        %vm511 = vcmp.ge.s32.totalorder %v445, 4294967295
        %vm512 = vcmp.lt.s32.totalorder %v444, 127
        %vm513 = vcmp.lt.s32.totalorder %v445, 127
        %vm514 = vmand %vm510, %vm512
        %vm515 = vmand %vm511, %vm513
        %v516 = vsel %vm514, %v502, 0.0
        %v517 = vsel %vm515, %v506, 0.0
        %v518 = vsel %vm514, %v503, 0.0
        %v519 = vsel %vm515, %v507, 0.0
        %v520 = vsel %vm514, %v504, 0.0
        %v521 = vsel %vm515, %v508, 0.0
        %v522 = vsel %vm514, %v505, 0.0
        %v523 = vsel %vm515, %v509, 0.0
        %v524 = vld [vmem:[%s2] sm:$0xff]
        %v525 = vld [vmem:[%s2 + $0x8] sm:$0xff]
        %v526 = vld [vmem:[%s2 + $0x10] sm:$0xff]
        %v527 = vld [vmem:[%s2 + $0x18] sm:$0xff]
        %v528 = vld [vmem:[%s3] sm:$0xff]
        %v529 = vld [vmem:[%s3 + $0x8] sm:$0xff]
        %v530 = vld [vmem:[%s3 + $0x10] sm:$0xff]
        %v531 = vld [vmem:[%s3 + $0x18] sm:$0xff]
        %533 = vset.pattern.permute.xlu0 0
        %534 = vperm.xlu0 %533, %v528
        %v535 = vpop.permute.xlu0 %534
        %538 = vset.pattern.permute.xlu0 0
        %539 = vperm.xlu0 %538, %v529
        %v540 = vpop.permute.xlu0 %539
        %543 = vset.pattern.permute.xlu0 0
        %544 = vperm.xlu0 %543, %v530
        %v545 = vpop.permute.xlu0 %544
        %548 = vset.pattern.permute.xlu0 0
        %549 = vperm.xlu0 %548, %v531
        %v550 = vpop.permute.xlu0 %549
        %vm552 = vcmask 785408
        %v554 = vsel %vm552, %v524, 0
        %v557 = vsel %vm552, %v525, 0
        %v560 = vsel %vm552, %v526, 0
        %v563 = vsel %vm552, %v527, 0
        %565 = vmatpush.msra.mxu0 0.0
        %566 = vmatpush.msra.mxu0 0.0
        %567 = vmatpush.msra.mxu0 0.0
        %568 = vmatpush.msra.mxu0 0.0
        %569 = vmatpush.msra.mxu0 %v522
        %570 = vmatpush.msra.mxu0 %v520
        %571 = vmatpush.msra.mxu0 %v518
        %572 = vmatpush.msra.mxu0 %v516
        %573 = vmatpush.msra.mxu0 %v366
        %574 = vmatpush.msra.mxu0 %v363
        %575 = vmatpush.msra.mxu0 %v360
        %576 = vmatpush.msra.mxu0 %v357
        %577 = vmatpush.msra.mxu0 %v483
        %578 = vmatpush.msra.mxu0 %v481
        %579 = vmatpush.msra.mxu0 %v479
        %580 = vmatpush.msra.mxu0 %v477
        %581 = vmatmul.f32.gmra.mxu0 %v554
        %v582 = vpop.f32.mrf.mxu0
        %v583 = vadd.f32 %v535, %v582
        %584 = vmatmul.f32.gmra.mxu0 %v557
        %v585 = vpop.f32.mrf.mxu0
        %v586 = vadd.f32 %v540, %v585
        %587 = vmatmul.f32.gmra.mxu0 %v560
        %v588 = vpop.f32.mrf.mxu0
        %v589 = vadd.f32 %v545, %v588
        %590 = vmatmul.f32.gmra.mxu0 %v563
        %v591 = vpop.f32.mrf.mxu0
        %v592 = vadd.f32 %v550, %v591
        %593 = vdwg.mxu0
        %594 = vmatpush.msra.mxu0 0.0
        %595 = vmatpush.msra.mxu0 0.0
        %596 = vmatpush.msra.mxu0 0.0
        %597 = vmatpush.msra.mxu0 0.0
        %598 = vmatpush.msra.mxu0 %v523
        %599 = vmatpush.msra.mxu0 %v521
        %600 = vmatpush.msra.mxu0 %v519
        %601 = vmatpush.msra.mxu0 %v517
        %602 = vmatpush.msra.mxu0 %v417
        %603 = vmatpush.msra.mxu0 %v414
        %604 = vmatpush.msra.mxu0 %v411
        %605 = vmatpush.msra.mxu0 %v408
        %606 = vmatpush.msra.mxu0 %v484
        %607 = vmatpush.msra.mxu0 %v482
        %608 = vmatpush.msra.mxu0 %v480
        %609 = vmatpush.msra.mxu0 %v478
        %610 = vmatmul.f32.gmra.mxu0 %v554
        %v611 = vpop.f32.mrf.mxu0
        %v612 = vadd.f32 %v535, %v611
        %613 = vmatmul.f32.gmra.mxu0 %v557
        %v614 = vpop.f32.mrf.mxu0
        %v615 = vadd.f32 %v540, %v614
        %616 = vmatmul.f32.gmra.mxu0 %v560
        %v617 = vpop.f32.mrf.mxu0
        %v618 = vadd.f32 %v545, %v617
        %619 = vmatmul.f32.gmra.mxu0 %v563
        %v620 = vpop.f32.mrf.mxu0
        %v621 = vadd.f32 %v550, %v620
        %622 = vdwg.mxu0
        %v623 = vmax.f32 %v583, 0.0
        %v624 = vmax.f32 %v612, 0.0
        %v625 = vmax.f32 %v586, 0.0
        %v626 = vmax.f32 %v615, 0.0
        %v627 = vmax.f32 %v589, 0.0
        %v628 = vmax.f32 %v618, 0.0
        %v629 = vmax.f32 %v592, 0.0
        %v630 = vmax.f32 %v621, 0.0
        %631 = vrot.lane.b32.xlu0 %v623, 1
        %v632 = vpop.permute.xlu0 %631
        %633 = vrot.lane.b32.xlu0 %v625, 1
        %v634 = vpop.permute.xlu0 %633
        %635 = vrot.lane.b32.xlu0 %v627, 1
        %v636 = vpop.permute.xlu0 %635
        %637 = vrot.lane.b32.xlu0 %v629, 1
        %v638 = vpop.permute.xlu0 %637
        %639 = vrot.lane.b32.xlu0 %v624, 1
        %v640 = vpop.permute.xlu0 %639
        %641 = vrot.lane.b32.xlu0 %v626, 1
        %v642 = vpop.permute.xlu0 %641
        %643 = vrot.lane.b32.xlu0 %v628, 1
        %v644 = vpop.permute.xlu0 %643
        %645 = vrot.lane.b32.xlu0 %v630, 1
        %v646 = vpop.permute.xlu0 %645
        %v647 = vsel %vm462, %v632, %v640
        %v648 = vsel %vm462, %v634, %v642
        %v649 = vsel %vm462, %v636, %v644
        %v650 = vsel %vm462, %v638, %v646
        %v651 = vsel %vm462, %v640, %v632
        %v652 = vsel %vm462, %v642, %v634
        %v653 = vsel %vm462, %v644, %v636
        %v654 = vsel %vm462, %v646, %v638
        %v655 = vsel %vm475, %v651, 0.0
        %v656 = vsel %vm476, %v647, 0.0
        %v657 = vsel %vm475, %v652, 0.0
        %v658 = vsel %vm476, %v648, 0.0
        %v659 = vsel %vm475, %v653, 0.0
        %v660 = vsel %vm476, %v649, 0.0
        %v661 = vsel %vm475, %v654, 0.0
        %v662 = vsel %vm476, %v650, 0.0
        %663 = vrot.lane.b32.xlu0 %v623, 127
        %v664 = vpop.permute.xlu0 %663
        %665 = vrot.lane.b32.xlu0 %v625, 127
        %v666 = vpop.permute.xlu0 %665
        %667 = vrot.lane.b32.xlu0 %v627, 127
        %v668 = vpop.permute.xlu0 %667
        %669 = vrot.lane.b32.xlu0 %v629, 127
        %v670 = vpop.permute.xlu0 %669
        %671 = vrot.lane.b32.xlu0 %v624, 127
        %v672 = vpop.permute.xlu0 %671
        %673 = vrot.lane.b32.xlu0 %v626, 127
        %v674 = vpop.permute.xlu0 %673
        %675 = vrot.lane.b32.xlu0 %v628, 127
        %v676 = vpop.permute.xlu0 %675
        %677 = vrot.lane.b32.xlu0 %v630, 127
        %v678 = vpop.permute.xlu0 %677
        %v679 = vsel %vm501, %v664, %v672
        %v680 = vsel %vm501, %v666, %v674
        %v681 = vsel %vm501, %v668, %v676
        %v682 = vsel %vm501, %v670, %v678
        %v683 = vsel %vm501, %v672, %v664
        %v684 = vsel %vm501, %v674, %v666
        %v685 = vsel %vm501, %v676, %v668
        %v686 = vsel %vm501, %v678, %v670
        %v687 = vsel %vm514, %v679, 0.0
        %v688 = vsel %vm515, %v683, 0.0
        %v689 = vsel %vm514, %v680, 0.0
        %v690 = vsel %vm515, %v684, 0.0
        %v691 = vsel %vm514, %v681, 0.0
        %v692 = vsel %vm515, %v685, 0.0
        %v693 = vsel %vm514, %v682, 0.0
        %v694 = vsel %vm515, %v686, 0.0
        %v695 = vld [vmem:[%s4] sm:$0xff]
        %v696 = vld [vmem:[%s4 + $0x8] sm:$0xff]
        %v697 = vld [vmem:[%s4 + $0x10] sm:$0xff]
        %v698 = vld [vmem:[%s4 + $0x18] sm:$0xff]
        %v699 = vld [vmem:[%s5] sm:$0xff]
        %v700 = vld [vmem:[%s5 + $0x8] sm:$0xff]
        %v701 = vld [vmem:[%s5 + $0x10] sm:$0xff]
        %v702 = vld [vmem:[%s5 + $0x18] sm:$0xff]
        %704 = vset.pattern.permute.xlu0 0
        %705 = vperm.xlu0 %704, %v699
        %v706 = vpop.permute.xlu0 %705
        %709 = vset.pattern.permute.xlu0 0
        %710 = vperm.xlu0 %709, %v700
        %v711 = vpop.permute.xlu0 %710
        %714 = vset.pattern.permute.xlu0 0
        %715 = vperm.xlu0 %714, %v701
        %v716 = vpop.permute.xlu0 %715
        %719 = vset.pattern.permute.xlu0 0
        %720 = vperm.xlu0 %719, %v702
        %v721 = vpop.permute.xlu0 %720
        %v724 = vsel %vm552, %v695, 0
        %v727 = vsel %vm552, %v696, 0
        %v730 = vsel %vm552, %v697, 0
        %v733 = vsel %vm552, %v698, 0
        %735 = vmatpush.msra.mxu0 0.0
        %736 = vmatpush.msra.mxu0 0.0
        %737 = vmatpush.msra.mxu0 0.0
        %738 = vmatpush.msra.mxu0 0.0
        %739 = vmatpush.msra.mxu0 %v693
        %740 = vmatpush.msra.mxu0 %v691
        %741 = vmatpush.msra.mxu0 %v689
        %742 = vmatpush.msra.mxu0 %v687
        %743 = vmatpush.msra.mxu0 %v629
        %744 = vmatpush.msra.mxu0 %v627
        %745 = vmatpush.msra.mxu0 %v625
        %746 = vmatpush.msra.mxu0 %v623
        %747 = vmatpush.msra.mxu0 %v661
        %748 = vmatpush.msra.mxu0 %v659
        %749 = vmatpush.msra.mxu0 %v657
        %750 = vmatpush.msra.mxu0 %v655
        %751 = vmatmul.f32.gmra.mxu0 %v724
        %v752 = vpop.f32.mrf.mxu0
        %v753 = vadd.f32 %v706, %v752
        %754 = vmatmul.f32.gmra.mxu0 %v727
        %v755 = vpop.f32.mrf.mxu0
        %v756 = vadd.f32 %v711, %v755
        %757 = vmatmul.f32.gmra.mxu0 %v730
        %v758 = vpop.f32.mrf.mxu0
        %v759 = vadd.f32 %v716, %v758
        %760 = vmatmul.f32.gmra.mxu0 %v733
        %v761 = vpop.f32.mrf.mxu0
        %v762 = vadd.f32 %v721, %v761
        %763 = vdwg.mxu0
        %764 = vmatpush.msra.mxu0 0.0
        %765 = vmatpush.msra.mxu0 0.0
        %766 = vmatpush.msra.mxu0 0.0
        %767 = vmatpush.msra.mxu0 0.0
        %768 = vmatpush.msra.mxu0 %v694
        %769 = vmatpush.msra.mxu0 %v692
        %770 = vmatpush.msra.mxu0 %v690
        %771 = vmatpush.msra.mxu0 %v688
        %772 = vmatpush.msra.mxu0 %v630
        %773 = vmatpush.msra.mxu0 %v628
        %774 = vmatpush.msra.mxu0 %v626
        %775 = vmatpush.msra.mxu0 %v624
        %776 = vmatpush.msra.mxu0 %v662
        %777 = vmatpush.msra.mxu0 %v660
        %778 = vmatpush.msra.mxu0 %v658
        %779 = vmatpush.msra.mxu0 %v656
        %780 = vmatmul.f32.gmra.mxu0 %v724
        %v781 = vpop.f32.mrf.mxu0
        %v782 = vadd.f32 %v706, %v781
        %783 = vmatmul.f32.gmra.mxu0 %v727
        %v784 = vpop.f32.mrf.mxu0
        %v785 = vadd.f32 %v711, %v784
        %786 = vmatmul.f32.gmra.mxu0 %v730
        %v787 = vpop.f32.mrf.mxu0
        %v788 = vadd.f32 %v716, %v787
        %789 = vmatmul.f32.gmra.mxu0 %v733
        %v790 = vpop.f32.mrf.mxu0
        %v791 = vadd.f32 %v721, %v790
        %792 = vdwg.mxu0
        %v793 = vmax.f32 %v753, 0.0
        %v794 = vmax.f32 %v782, 0.0
        %v795 = vmax.f32 %v756, 0.0
        %v796 = vmax.f32 %v785, 0.0
        %v797 = vmax.f32 %v759, 0.0
        %v798 = vmax.f32 %v788, 0.0
        %v799 = vmax.f32 %v762, 0.0
        %v800 = vmax.f32 %v791, 0.0
        %v801 = vadd.f32 %v319, %v793
        %v802 = vadd.f32 %v320, %v795
        %v803 = vadd.f32 %v321, %v797
        %v804 = vadd.f32 %v322, %v799
        %v805 = vmax.f32 %v801, 0.0
        %v806 = vmax.f32 %v802, 0.0
        %v807 = vmax.f32 %v803, 0.0
        %v808 = vmax.f32 %v804, 0.0
        %809 = vst [vmem:[%s315] sm:$0xff] %v805
        %810 = vst [vmem:[%s315 + $0x8] sm:$0xff] %v806
        %811 = vst [vmem:[%s315 + $0x10] sm:$0xff] %v807
        %812 = vst [vmem:[%s315 + $0x18] sm:$0xff] %v808
        %v813 = vld [vmem:[%s368] sm:$0xff]
        %v814 = vld [vmem:[%s368 + $0x8] sm:$0xff]
        %v815 = vld [vmem:[%s368 + $0x10] sm:$0xff]
        %v816 = vld [vmem:[%s368 + $0x18] sm:$0xff]
        %v817 = vadd.f32 %v813, %v794
        %v818 = vadd.f32 %v814, %v796
        %v819 = vadd.f32 %v815, %v798
        %v820 = vadd.f32 %v816, %v800
        %v821 = vmax.f32 %v817, 0.0
        %v822 = vmax.f32 %v818, 0.0
        %v823 = vmax.f32 %v819, 0.0
        %v824 = vmax.f32 %v820, 0.0
        %s825 = scalar_lea.vmem %s315, 32 [#allocation7]
        %826 = vst [vmem:[%s825] sm:$0xff] %v821
        %827 = vst [vmem:[%s825 + $0x8] sm:$0xff] %v822
        %828 = vst [vmem:[%s825 + $0x10] sm:$0xff] %v823
        %829 = vst [vmem:[%s825 + $0x18] sm:$0xff] %v824
        %s830 = sand.u32 %s170, 1
        %s831 = scalar_lea.sflag [#allocation4], %s830
        %s832 = sand.u32 %s170, 1
        %s833 = smul.addr %s832, 64
        %s834 = scalar_lea.vmem [#allocation7], %s833
        // Predicated region
        $region53: #{tpu_custom_call.1} parent=43 // pred_check
          %p835 = pneg %p180
        $region54: #{tpu_custom_call.1} parent=43 // pred_check_branch
          %837 = sbr.rel (%p835) target = $region56
        $region55: #{tpu_custom_call.1} parent=43 // pred_region
          %s838 = smul.u32 2, %s26
          %840 = vsyncadd %s831, 0
          %s841 = smul.addr %s838, 4
          %s842 = smul.addr %s841, 8
          %s843 = scalar_lea.hbm %s6, %s842
          %s844 = sshll.u32 %s834, 4
          %s845 = int_to_ptr.vmem [resolvable:$true] %s844
          %s846 = sshll.u32 %s843, 4
          %s847 = int_to_ptr.hbm [resolvable:$true] %s846
          %852 = dma.vmem_to_hbm [thread:$0]  %s845, 1024, %s847, %s831, 128, 128, 8
        $region56: #{tpu_custom_call.1} parent=43 // pred_fallthru
          _
      $region44: #{tpu_custom_call.1} parent=5 // pred_fallthru
        _
      %p853 = scmp.le.s32.totalorder 2, %s21
      // Predicated region
      $region57: #{tpu_custom_call.1} parent=5 // pred_check
        %p854 = pneg %p853
      $region58: #{tpu_custom_call.1} parent=5 // pred_check_branch
        %856 = sbr.rel (%p854) target = $region60
      $region59: #{tpu_custom_call.1} parent=5 // pred_region
        %s857 = ssub.s32 %s21, 2
        // Predicated region
        $region61: #{tpu_custom_call.1} parent=59 // pred_check
          %p858 = pneg %p186
        $region62: #{tpu_custom_call.1} parent=59 // pred_check_branch
          %860 = sbr.rel (%p858) target = $region64
        $region63: #{tpu_custom_call.1} parent=59 // pred_region
          %s861 = sand.u32 %s171, 1
          %s862 = scalar_lea.sflag [#allocation4], %s861
          %s863 = sand.u32 %s171, 1
          %s864 = smul.addr %s863, 64
          %s865 = scalar_lea.vmem [#allocation7], %s864
          %867 = dma.done %s862, 1024
        $region64: #{tpu_custom_call.1} parent=59 // pred_fallthru
          _
      $region60: #{tpu_custom_call.1} parent=5 // pred_fallthru
        _
    $region6: #{tpu_custom_call.1} parent=1 // loop_footer
      %s25 = sadd.s32 1, %s21
    $region7: #{tpu_custom_call.1} parent=1 // loop_footer_branch
      %20 = sbr.rel target = $region3
    $region8: #{tpu_custom_call.1} parent=1 // loop_exit
      _
    %868 = vsyncpa [#allocation3], 1
    %s869 = scalar_lea.sflag [#allocation3], 1
    %870 = vsyncpa %s869, 1
    %871 = vsyncpa [#allocation6], 1
    %s872 = scalar_lea.sflag [#allocation6], 1
    %873 = vsyncpa %s872, 1
    %874 = vsyncpa [#allocation4], 1
    %s875 = scalar_lea.sflag [#allocation4], 1
    %876 = vsyncpa %s875, 1

</llo_original>
